<compile_context>
chip_gen: v5e
topology: v5e:2x2
jax: 0.10.0
libtpu: 0.0.40
codegen_flags: <defaults>
</compile_context>

<pallas_src>
import functools
import math

import jax
import jax.numpy as jnp
from jax.experimental import pallas as pl
from jax.experimental.pallas import tpu as pltpu

_LANE = 128
_SUBLANE = 8


# --------------------------------------------------------------------------
# small helpers
# --------------------------------------------------------------------------
def _round_up(x, m):
    return ((x + m - 1) // m) * m


def _pad_rows_to(x2d, m):
    r = _round_up(x2d.shape[0], m)
    if r == x2d.shape[0]:
        return x2d
    return jnp.pad(x2d, ((0, r - x2d.shape[0]), (0, 0)))


def _pad_last_to(x, n):
    if x.shape[-1] == n:
        return x
    pad = [(0, 0)] * (x.ndim - 1) + [(0, n - x.shape[-1])]
    return jnp.pad(x, pad)


def _clamp_vmem(est_bytes):
    # leave headroom under v7x's 64 MiB physical VMEM; floor well above tiny demos
    return int(min(max(2 * est_bytes, 8 * 2**20), 48 * 2**20))


def _choose_tm(Mp, K, Np, compute_dtype, out_dtype, f_hidden=0, budget=24 * 2**20):
    """Largest row-tile (multiple of 8, capped at 512) whose streamed footprint
    (double-buffered x/out tiles + f32 intermediates) stays under `budget`."""
    cb = jnp.dtype(compute_dtype).itemsize
    ob = jnp.dtype(out_dtype).itemsize
    tm = min(512, Mp)

    def est(t):
        return 2 * t * K * cb + 2 * t * Np * ob + t * (Np + f_hidden) * 4

    while tm > _SUBLANE and est(tm) > budget:
        tm = max(_SUBLANE, (tm // 2 // _SUBLANE) * _SUBLANE)
    return tm


# --------------------------------------------------------------------------
# Kernel 1: tiled linear  y = x @ W + b
# --------------------------------------------------------------------------
def _linear_kernel(x_ref, w_ref, b_ref, o_ref):
    acc = jnp.dot(x_ref[...], w_ref[...], preferred_element_type=jnp.float32)
    o_ref[...] = (acc + b_ref[...]).astype(o_ref.dtype)


def _linear_ref_math(x2d, w, b, out_dtype, compute_dtype):
    acc = jnp.dot(x2d.astype(compute_dtype), w.astype(compute_dtype),
                  preferred_element_type=jnp.float32)
    return (acc + b.reshape(1, -1).astype(jnp.float32)).astype(out_dtype)


def linear(x2d, w, b, *, out_dtype=None, compute_dtype=jnp.bfloat16, use_pallas=True):
    M, K = x2d.shape
    _, N = w.shape
    out_dtype = out_dtype if out_dtype is not None else x2d.dtype
    if not use_pallas:
        return _linear_ref_math(x2d, w, b, out_dtype, compute_dtype)

    Np = _round_up(N, _LANE)                               # lane-dense output
    wp = _pad_last_to(w, Np).astype(compute_dtype)
    bp = _pad_last_to(b.reshape(1, N).astype(jnp.float32), Np)
    xp = _pad_rows_to(x2d, _SUBLANE).astype(compute_dtype)
    Mp = xp.shape[0]

    cb = jnp.dtype(compute_dtype).itemsize
    ob = jnp.dtype(out_dtype).itemsize
    tm = _choose_tm(Mp, K, Np, compute_dtype, out_dtype)
    # TODO(synk): for very large d_model (>=2048) also tile the N dimension so
    # the resident weight double-buffer fits v7x's 64 MiB VMEM.
    vmem_est = (2 * tm * K * cb + 2 * tm * Np * ob
                + 2 * K * Np * cb + 2 * Np * 4 + tm * Np * 4)
    cost = pl.CostEstimate(
        flops=2 * Mp * K * Np, transcendentals=0,
        bytes_accessed=Mp * K * cb + K * Np * cb + Mp * Np * ob + Np * 4)

    out = pl.pallas_call(
        _linear_kernel,
        out_shape=jax.ShapeDtypeStruct((Mp, Np), out_dtype),
        grid=(pl.cdiv(Mp, tm),),
        in_specs=[
            pl.BlockSpec((tm, K), lambda i: (i, 0)),
            pl.BlockSpec((K, Np), lambda i: (0, 0)),
            pl.BlockSpec((1, Np), lambda i: (0, 0)),
        ],
        out_specs=pl.BlockSpec((tm, Np), lambda i: (i, 0)),
        compiler_params=pltpu.CompilerParams(
            dimension_semantics=("parallel",),
            vmem_limit_bytes=_clamp_vmem(vmem_est)),
        cost_estimate=cost,
    )(xp, wp, bp)
    return out[:M, :N]


# --------------------------------------------------------------------------
# Kernel 2: fused FFN  y = act(x @ W1 + b1) @ W2 + b2   (h never hits HBM)
# --------------------------------------------------------------------------
def _ffn_kernel(x_ref, w1_ref, b1_ref, w2_ref, b2_ref, o_ref, *, activation):
    h = jnp.dot(x_ref[...], w1_ref[...], preferred_element_type=jnp.float32)
    h = h + b1_ref[...]
    if activation == "relu":
        h = jnp.maximum(h, 0.0)
    else:
        h = jax.nn.gelu(h)
    y = jnp.dot(h.astype(w2_ref.dtype), w2_ref[...],
                preferred_element_type=jnp.float32)
    y = y + b2_ref[...]
    o_ref[...] = y.astype(o_ref.dtype)


def _ffn_ref_math(x2d, w1, b1, w2, b2, activation, out_dtype, compute_dtype):
    h = jnp.dot(x2d.astype(compute_dtype), w1.astype(compute_dtype),
                preferred_element_type=jnp.float32) + b1.reshape(1, -1).astype(jnp.float32)
    h = jnp.maximum(h, 0.0) if activation == "relu" else jax.nn.gelu(h)
    y = jnp.dot(h.astype(compute_dtype), w2.astype(compute_dtype),
                preferred_element_type=jnp.float32) + b2.reshape(1, -1).astype(jnp.float32)
    return y.astype(out_dtype)


def ffn(x2d, w1, b1, w2, b2, *, activation="gelu", out_dtype=None,
        compute_dtype=jnp.bfloat16, use_pallas=True):
    M, D = x2d.shape
    F = w1.shape[1]
    O = w2.shape[1]
    out_dtype = out_dtype if out_dtype is not None else x2d.dtype
    if not use_pallas:
        return _ffn_ref_math(x2d, w1, b1, w2, b2, activation, out_dtype, compute_dtype)

    Fp = _round_up(F, _LANE)
    Op = _round_up(O, _LANE)
    w1p = _pad_last_to(w1, Fp).astype(compute_dtype)
    b1p = _pad_last_to(b1.reshape(1, F).astype(jnp.float32), Fp)
    w2p = _pad_last_to(jnp.pad(w2, ((0, Fp - F), (0, 0))), Op).astype(compute_dtype)
    b2p = _pad_last_to(b2.reshape(1, O).astype(jnp.float32), Op)
    xp = _pad_rows_to(x2d, _SUBLANE).astype(compute_dtype)
    Mp = xp.shape[0]

    cb = jnp.dtype(compute_dtype).itemsize
    ob = jnp.dtype(out_dtype).itemsize
    tm = _choose_tm(Mp, D, Op, compute_dtype, out_dtype, f_hidden=Fp)
    vmem_est = (2 * tm * D * cb + 2 * tm * Op * ob
                + 2 * D * Fp * cb + 2 * Fp * Op * cb
                + 2 * (Fp + Op) * 4 + tm * (Fp + Op) * 4)
    cost = pl.CostEstimate(
        flops=2 * Mp * D * Fp + 2 * Mp * Fp * Op,
        transcendentals=Mp * Fp,
        bytes_accessed=Mp * D * cb + D * Fp * cb + Fp * Op * cb + Mp * Op * ob)

    out = pl.pallas_call(
        functools.partial(_ffn_kernel, activation=activation),
        out_shape=jax.ShapeDtypeStruct((Mp, Op), out_dtype),
        grid=(pl.cdiv(Mp, tm),),
        in_specs=[
            pl.BlockSpec((tm, D), lambda i: (i, 0)),
            pl.BlockSpec((D, Fp), lambda i: (0, 0)),
            pl.BlockSpec((1, Fp), lambda i: (0, 0)),
            pl.BlockSpec((Fp, Op), lambda i: (0, 0)),
            pl.BlockSpec((1, Op), lambda i: (0, 0)),
        ],
        out_specs=pl.BlockSpec((tm, Op), lambda i: (i, 0)),
        compiler_params=pltpu.CompilerParams(
            dimension_semantics=("parallel",),
            vmem_limit_bytes=_clamp_vmem(vmem_est)),
        cost_estimate=cost,
    )(xp, w1p, b1p, w2p, b2p)
    return out[:M, :O]


# --------------------------------------------------------------------------
# Kernel 3: row-tiled LayerNorm (f32 statistics)
# --------------------------------------------------------------------------
def _layernorm_kernel(x_ref, g_ref, b_ref, o_ref, *, eps):
    x = x_ref[...].astype(jnp.float32)
    mu = jnp.mean(x, axis=-1, keepdims=True)
    xc = x - mu
    var = jnp.mean(xc * xc, axis=-1, keepdims=True)
    y = xc * jax.lax.rsqrt(var + eps)
    o_ref[...] = (y * g_ref[...] + b_ref[...]).astype(o_ref.dtype)


def _layernorm_ref_math(x2d, g, b, eps, out_dtype):
    x = x2d.astype(jnp.float32)
    mu = jnp.mean(x, axis=-1, keepdims=True)
    xc = x - mu
    var = jnp.mean(xc * xc, axis=-1, keepdims=True)
    y = xc * jax.lax.rsqrt(var + eps)
    return (y * g.reshape(1, -1).astype(jnp.float32)
            + b.reshape(1, -1).astype(jnp.float32)).astype(out_dtype)


def layer_norm(x, g, b, *, eps=1e-5, use_pallas=True):
    shape = x.shape
    D = shape[-1]
    x2d = x.reshape(-1, D)
    if not use_pallas:
        return _layernorm_ref_math(x2d, g, b, eps, x.dtype).reshape(shape)

    xp = _pad_rows_to(x2d.astype(jnp.float32), _SUBLANE)
    Mp = xp.shape[0]
    tm = min(512, Mp)
    out = pl.pallas_call(
        functools.partial(_layernorm_kernel, eps=eps),
        out_shape=jax.ShapeDtypeStruct((Mp, D), x.dtype),
        grid=(pl.cdiv(Mp, tm),),
        in_specs=[
            pl.BlockSpec((tm, D), lambda i: (i, 0)),
            pl.BlockSpec((1, D), lambda i: (0, 0)),
            pl.BlockSpec((1, D), lambda i: (0, 0)),
        ],
        out_specs=pl.BlockSpec((tm, D), lambda i: (i, 0)),
        compiler_params=pltpu.CompilerParams(dimension_semantics=("parallel",)),
    )(xp, g.reshape(1, D).astype(jnp.float32), b.reshape(1, D).astype(jnp.float32))
    return out[:x2d.shape[0]].reshape(shape)


# --------------------------------------------------------------------------
# Kernel 4: scaled-dot attention (one (batch*head) slice per grid step)
# --------------------------------------------------------------------------
def _attention_kernel(q_ref, k_ref, v_ref, bias_ref, o_ref, p_ref, *, scale):
    q = q_ref[0]                                            # (Sq, dh)  bf16
    k = k_ref[0]                                            # (Sk, dh)  bf16
    v = v_ref[0]                                            # (Sk, dh)  bf16
    s = jax.lax.dot_general(q, k, (((1,), (1,)), ((), ())),
                            preferred_element_type=jnp.float32)
    s = s * scale + bias_ref[0]                             # f32 logits
    m = jnp.max(s, axis=-1, keepdims=True)
    e = jnp.exp(s - m)
    p = e / jnp.sum(e, axis=-1, keepdims=True)              # f32 softmax
    o = jnp.dot(p.astype(v.dtype), v, preferred_element_type=jnp.float32)
    o_ref[0] = o.astype(o_ref.dtype)
    p_ref[0] = p.astype(p_ref.dtype)


def _attention_ref_math(q, k, v, bias, scale, out_dtype):
    s = jax.lax.dot_general(q, k, (((2,), (2,)), ((0,), (0,))),
                            preferred_element_type=jnp.float32)
    s = s * scale + bias
    m = jnp.max(s, axis=-1, keepdims=True)
    e = jnp.exp(s - m)
    p = e / jnp.sum(e, axis=-1, keepdims=True)
    o = jax.lax.dot_general(p.astype(v.dtype), v, (((2,), (1,)), ((0,), (0,))),
                            preferred_element_type=jnp.float32)
    return o.astype(out_dtype), p.astype(jnp.float32)


def scaled_dot_attention(q, k, v, bias, *, out_dtype=None, use_pallas=True):
    """q: (BH, Sq, dh), k/v: (BH, Sk, dh), bias: (BH, Sq, Sk) additive f32."""
    BH, Sq, dh = q.shape
    Sk = k.shape[1]
    scale = 1.0 / math.sqrt(dh)
    out_dtype = out_dtype if out_dtype is not None else q.dtype
    if not use_pallas:
        return _attention_ref_math(q, k, v, bias, scale, out_dtype)

    out, probs = pl.pallas_call(
        functools.partial(_attention_kernel, scale=scale),
        out_shape=(jax.ShapeDtypeStruct((BH, Sq, dh), out_dtype),
                   jax.ShapeDtypeStruct((BH, Sq, Sk), jnp.float32)),
        grid=(BH,),
        in_specs=[
            pl.BlockSpec((1, Sq, dh), lambda i: (i, 0, 0)),
            pl.BlockSpec((1, Sk, dh), lambda i: (i, 0, 0)),
            pl.BlockSpec((1, Sk, dh), lambda i: (i, 0, 0)),
            pl.BlockSpec((1, Sq, Sk), lambda i: (i, 0, 0)),
        ],
        out_specs=(pl.BlockSpec((1, Sq, dh), lambda i: (i, 0, 0)),
                   pl.BlockSpec((1, Sq, Sk), lambda i: (i, 0, 0))),
        compiler_params=pltpu.CompilerParams(dimension_semantics=("parallel",)),
    )(q, k, v, bias.astype(jnp.float32))
    return out, probs


# --------------------------------------------------------------------------
# Multi-head attention blocks
# --------------------------------------------------------------------------
def multi_head_self_attention(x, p, key_bias, nhead, *, compute_dtype=jnp.bfloat16,
                              use_pallas=True):
    B, S, D = x.shape
    H = nhead
    dh = D // H
    x2d = x.reshape(B * S, D)
    qkv = linear(x2d, p["sa_w_qkv"], p["sa_b_qkv"], out_dtype=compute_dtype,
                 compute_dtype=compute_dtype, use_pallas=use_pallas)
    qkv = qkv.reshape(B, S, 3, H, dh)
    q = qkv[:, :, 0].transpose(0, 2, 1, 3).reshape(B * H, S, dh)
    k = qkv[:, :, 1].transpose(0, 2, 1, 3).reshape(B * H, S, dh)
    v = qkv[:, :, 2].transpose(0, 2, 1, 3).reshape(B * H, S, dh)
    bias = jnp.broadcast_to(key_bias[:, None, None, :], (B, H, S, S)).reshape(B * H, S, S)
    ctx, probs = scaled_dot_attention(q, k, v, bias, out_dtype=compute_dtype,
                                      use_pallas=use_pallas)
    ctx = ctx.reshape(B, H, S, dh).transpose(0, 2, 1, 3).reshape(B * S, D)
    out = linear(ctx, p["sa_w_o"], p["sa_b_o"], out_dtype=x.dtype,
                 compute_dtype=compute_dtype, use_pallas=use_pallas).reshape(B, S, D)
    attn_w = probs.reshape(B, H, S, S).mean(axis=1)
    return out, attn_w


def multi_head_cross_attention(x, memory, p, nhead, *, compute_dtype=jnp.bfloat16,
                               use_pallas=True):
    B, S, D = x.shape
    Mt = memory.shape[2]
    H = nhead
    dh = D // H
    q = linear(x.reshape(B * S, D), p["ca_w_q"], p["ca_b_q"], out_dtype=compute_dtype,
               compute_dtype=compute_dtype, use_pallas=use_pallas)
    kv = linear(memory.reshape(B * S * Mt, D), p["ca_w_kv"], p["ca_b_kv"],
                out_dtype=compute_dtype, compute_dtype=compute_dtype,
                use_pallas=use_pallas)
    q = q.reshape(B * S, H, dh).reshape(B * S * H, 1, dh)
    kv = kv.reshape(B, S, Mt, 2, H, dh)
    k = kv[:, :, :, 0].transpose(0, 1, 3, 2, 4).reshape(B * S * H, Mt, dh)
    v = kv[:, :, :, 1].transpose(0, 1, 3, 2, 4).reshape(B * S * H, Mt, dh)
    bias = jnp.zeros((B * S * H, 1, Mt), jnp.float32)
    ctx, probs = scaled_dot_attention(q, k, v, bias, out_dtype=compute_dtype,
                                      use_pallas=use_pallas)
    ctx = ctx.reshape(B * S, H * dh)
    out = linear(ctx, p["ca_w_o"], p["ca_b_o"], out_dtype=x.dtype,
                 compute_dtype=compute_dtype, use_pallas=use_pallas).reshape(B, S, D)
    attn_w = probs.reshape(B, S, H, Mt).mean(axis=2)
    return out, attn_w


# --------------------------------------------------------------------------
# Decoder layer / decoder forward
# --------------------------------------------------------------------------
def temporal_decoder_layer_forward(tgt, memory, key_bias, p, *, nhead, activation,
                                   compute_dtype=jnp.bfloat16, use_pallas=True):
    # TODO(synk): TemporalDecoderLayer is not defined in the provided spec; this assumes
    # post-norm (self-attn -> per-timestep cross-attn -> FFN) with dropout disabled.
    sa_out, sa_w = multi_head_self_attention(tgt, p, key_bias, nhead,
                                             compute_dtype=compute_dtype,
                                             use_pallas=use_pallas)
    tgt = layer_norm(tgt + sa_out, p["ln1_g"], p["ln1_b"], use_pallas=use_pallas)
    ca_out, ca_w = multi_head_cross_attention(tgt, memory, p, nhead,
                                              compute_dtype=compute_dtype,
                                              use_pallas=use_pallas)
    tgt = layer_norm(tgt + ca_out, p["ln2_g"], p["ln2_b"], use_pallas=use_pallas)
    B, S, D = tgt.shape
    ff = ffn(tgt.reshape(B * S, D), p["ffn_w1"], p["ffn_b1"], p["ffn_w2"], p["ffn_b2"],
             activation=activation, out_dtype=tgt.dtype, compute_dtype=compute_dtype,
             use_pallas=use_pallas).reshape(B, S, D)
    tgt = layer_norm(tgt + ff, p["ln3_g"], p["ln3_b"], use_pallas=use_pallas)
    return tgt, sa_w, ca_w


def temporal_decoder_forward(key, val, data_dict, padding_mask_dict, temporal_cols,
                             img_cols, nlp_cols, params, *, nhead, activation="gelu",
                             compute_dtype=jnp.bfloat16, use_pallas=True):
    tgt = val
    # memory = stack of other temporal columns + img/nlp tokens broadcast over time
    memory_li = [data_dict[c] for c in temporal_cols if c != key]
    memory = jnp.stack(memory_li, axis=-2)                      # (B, S, n_t-1, D)
    for c in list(img_cols) + list(nlp_cols):
        d = data_dict[c]                                        # (B, N, D)
        d = jnp.broadcast_to(d[:, None, :, :],
                             (d.shape[0], memory.shape[1], d.shape[1], d.shape[2]))
        memory = jnp.concatenate([memory, d], axis=-2)          # (B, S, M, D)

    pm = padding_mask_dict[f"{key}_revert_padding_mask"]        # (B, S-1), 1 = valid
    pm = jnp.concatenate([jnp.ones((val.shape[0], 1), pm.dtype), pm], axis=-1)
    key_bias = jnp.where(pm == 1, 0.0, -jnp.inf).astype(jnp.float32)   # (B, S)

    sa_w = ca_w = None
    for lp in params["layers"]:
        tgt, sa_w, ca_w = temporal_decoder_layer_forward(
            tgt, memory, key_bias, lp, nhead=nhead, activation=activation,
            compute_dtype=compute_dtype, use_pallas=use_pallas)
    return tgt, sa_w, ca_w


# --------------------------------------------------------------------------
# Parameter init (deterministic, synthetic)
# --------------------------------------------------------------------------
def init_temporal_decoder_params(rng, d_model, nhead, d_ff, num_layers,
                                 dtype=jnp.float32):
    D, F = d_model, d_ff

    def uni(k, fan_in, shape):
        s = 1.0 / math.sqrt(fan_in)
        return jax.random.uniform(k, shape, dtype, -s, s)

    layers = []
    for _ in range(num_layers):
        rng, *ks = jax.random.split(rng, 15)
        layers.append({
            "sa_w_qkv": uni(ks[0], D, (D, 3 * D)), "sa_b_qkv": uni(ks[1], D, (3 * D,)),
            "sa_w_o": uni(ks[2], D, (D, D)),       "sa_b_o": uni(ks[3], D, (D,)),
            "ca_w_q": uni(ks[4], D, (D, D)),       "ca_b_q": uni(ks[5], D, (D,)),
            "ca_w_kv": uni(ks[6], D, (D, 2 * D)),  "ca_b_kv": uni(ks[7], D, (2 * D,)),
            "ca_w_o": uni(ks[8], D, (D, D)),       "ca_b_o": uni(ks[9], D, (D,)),
            "ffn_w1": uni(ks[10], D, (D, F)),      "ffn_b1": uni(ks[11], D, (F,)),
            "ffn_w2": uni(ks[12], F, (F, D)),      "ffn_b2": uni(ks[13], F, (D,)),
            "ln1_g": jnp.ones((D,), dtype), "ln1_b": jnp.zeros((D,), dtype),
            "ln2_g": jnp.ones((D,), dtype), "ln2_b": jnp.zeros((D,), dtype),
            "ln3_g": jnp.ones((D,), dtype), "ln3_b": jnp.zeros((D,), dtype),
        })
    return {"layers": layers}


# --------------------------------------------------------------------------
# Demo / self-check
# --------------------------------------------------------------------------
if __name__ == "__main__":
    B, D, H, F, L = 2, 32, 4, 64, 2
    S = 9                                   # 1 global token + 8 temporal tokens
    key = "open"
    temporal_cols = ["open", "high", "low"]
    img_cols = ["img"]
    nlp_cols = ["nlp"]
    activation = "gelu"

    root = jax.random.PRNGKey(0)
    kp, kd = jax.random.split(root)
    params = init_temporal_decoder_params(kp, D, H, F, L)

    ks = jax.random.split(kd, 5)
    val = jax.random.normal(ks[0], (B, S, D), jnp.float32)
    data_dict = {
        "open": val,
        "high": jax.random.normal(ks[1], (B, S, D), jnp.float32),
        "low": jax.random.normal(ks[2], (B, S, D), jnp.float32),
        "img": jax.random.normal(ks[3], (B, 5, D), jnp.float32),
        "nlp": jax.random.normal(ks[4], (B, 3, D), jnp.float32),
    }
    pm = jnp.array([[1, 1, 1, 1, 1, 1, 1, 1],
                    [1, 1, 1, 1, 1, 0, 0, 0]], jnp.float32)
    padding_mask_dict = {"open_revert_padding_mask": pm}

    out, sa_w, ca_w = temporal_decoder_forward(
        key, val, data_dict, padding_mask_dict, temporal_cols, img_cols, nlp_cols,
        params, nhead=H, activation=activation, use_pallas=True)
    out, sa_w, ca_w = jax.block_until_ready((out, sa_w, ca_w))

    # Pure-JAX reference with identical dtype handling.
    ref_out, ref_sa, ref_ca = temporal_decoder_forward(
        key, val, data_dict, padding_mask_dict, temporal_cols, img_cols, nlp_cols,
        params, nhead=H, activation=activation, use_pallas=False)

    M_tok = (len(temporal_cols) - 1) + 5 + 3
    assert out.shape == (B, S, D)
    assert sa_w.shape == (B, S, S)
    assert ca_w.shape == (B, S, M_tok)
    assert jnp.allclose(out, ref_out, atol=2e-2, rtol=2e-2)
    assert jnp.allclose(sa_w, ref_sa, atol=2e-2, rtol=2e-2)
    assert jnp.allclose(ca_w, ref_ca, atol=2e-2, rtol=2e-2)
    assert not bool(jnp.any(jnp.isnan(out)))

    print("KERNEL_OK")
</pallas_src>

<mosaic_0001>
module attributes {stable_mosaic.version = 11 : i64} {
  func.func @_linear_kernel(%arg0: i32, %arg1: memref<24x32xbf16, #tpu.memory_space<vmem>>, %arg2: memref<32x128xbf16, #tpu.memory_space<vmem>>, %arg3: memref<1x128xf32, #tpu.memory_space<vmem>>, %arg4: memref<24x128xbf16, #tpu.memory_space<vmem>>) attributes {dimension_semantics = [#tpu.dimension_semantics<parallel>], iteration_bounds = array<i64: 1>, scalar_prefetch = 0 : i64, scratch_operands = 0 : i64, tpu.core_type = #tpu.core_type<tc>, window_params = [{transform_indices = @transform_0, window_bounds = array<i64: 24, 32>}, {pipeline_mode = #tpu.pipeline_mode<synchronous>, transform_indices = @transform_1, window_bounds = array<i64: 32, 128>}, {pipeline_mode = #tpu.pipeline_mode<synchronous>, transform_indices = @transform_2, window_bounds = array<i64: 1, 128>}, {transform_indices = @transform_3, window_bounds = array<i64: 24, 128>}]} {
    %c0 = arith.constant 0 : index
    %c0_0 = arith.constant 0 : index
    %0 = vector.load %arg1[%c0, %c0_0] : memref<24x32xbf16, #tpu.memory_space<vmem>>, vector<24x32xbf16>
    %c0_1 = arith.constant 0 : index
    %c0_2 = arith.constant 0 : index
    %1 = vector.load %arg2[%c0_1, %c0_2] : memref<32x128xbf16, #tpu.memory_space<vmem>>, vector<32x128xbf16>
    %cst = arith.constant dense<0.000000e+00> : vector<24x128xf32>
    %2 = tpu.matmul %0, %1, %cst {dimension_numbers = #tpu.dot_dimension_numbers<[1], [0], [0], [1], [0, 0, 1, 1], [], []>} : vector<24x32xbf16>, vector<32x128xbf16>, vector<24x128xf32> -> vector<24x128xf32>
    %c0_3 = arith.constant 0 : index
    %c0_4 = arith.constant 0 : index
    %3 = vector.load %arg3[%c0_3, %c0_4] : memref<1x128xf32, #tpu.memory_space<vmem>>, vector<1x128xf32>
    %4 = vector.broadcast %3 : vector<1x128xf32> to vector<24x128xf32>
    %5 = arith.addf %2, %4 : vector<24x128xf32>
    %6 = arith.truncf %5 : vector<24x128xf32> to vector<24x128xbf16>
    %c0_5 = arith.constant 0 : index
    %c0_6 = arith.constant 0 : index
    %7 = vector.load %arg4[%c0_5, %c0_6] : memref<24x128xbf16, #tpu.memory_space<vmem>>, vector<24x128xbf16>
    tpu.vector_store %arg4[%c0_5, %c0_6], %6 {strides = array<i32>} : memref<24x128xbf16, #tpu.memory_space<vmem>>, vector<24x128xbf16>,
    return
  }
  func.func @transform_0(%arg0: i32) -> (i32, i32) {
    %c0_i32 = arith.constant 0 : i32
    %c0_i32_0 = arith.constant 0 : i32
    return %arg0, %c0_i32 : i32, i32
  }
  func.func @transform_1(%arg0: i32) -> (i32, i32) {
    %c0_i32 = arith.constant 0 : i32
    %c0_i32_0 = arith.constant 0 : i32
    %c0_i32_1 = arith.constant 0 : i32
    return %c0_i32, %c0_i32_0 : i32, i32
  }
  func.func @transform_2(%arg0: i32) -> (i32, i32) {
    %c0_i32 = arith.constant 0 : i32
    %c0_i32_0 = arith.constant 0 : i32
    %c0_i32_1 = arith.constant 0 : i32
    return %c0_i32, %c0_i32_0 : i32, i32
  }
  func.func @transform_3(%arg0: i32) -> (i32, i32) {
    %c0_i32 = arith.constant 0 : i32
    %c0_i32_0 = arith.constant 0 : i32
    return %arg0, %c0_i32 : i32, i32
  }
}

</mosaic_0001>

<llo_original>
// kernel: tpu_custom_call.1
$region0: #{tpu_custom_call.1}
  #allocation0 [shape = 'u32[]', space=smem, size = 0x4, offset = 0x4, fixed_abs, tag = 'smem constant byte address 0x4 - core index']
  #allocation1 [shape = 'u32[72,128]{1,0:T(1,128)}', space=vmem, size = 0x9000, scoped, tag = 'internal scratch']
  %s0 = inlined_call_operand.hbm [shape: bf16[24,32], index: 0, kind: input, shape index: {}]
  %s1 = inlined_call_operand.hbm [shape: bf16[32,128], index: 1, kind: input, shape index: {}]
  %s2 = inlined_call_operand.vmem [shape: f32[1,128], index: 2, kind: input, shape index: {}]
  %s3 = inlined_call_operand.hbm [shape: bf16[24,128], index: 3, kind: output, shape index: {}]
  %s4 = sld [smem:[#allocation0]]
  $region30: #{tpu_custom_call.1} parent=0
    _
  %s6 = ssub.s32 1, %s4
  %s7 = scalar_select 0, %s6, %s4
  $region1: #{tpu_custom_call.1} parent=0
    #allocation2 [shape = 'u8[6144]{0}', space=vmem, size = 0x1800, scoped, tag = 'input window, operand 0, single buffered']
    #allocation3 [shape = 's32[1]{0}', space=sflag, size = 0x4, scoped, tag = 'scoped memory for tpu_custom_call.1']
    #allocation4 [shape = 's32[1]{0}', space=sflag, size = 0x4, scoped, tag = 'scoped memory for tpu_custom_call.1']
    #allocation5 [shape = 'u8[8192]{0}', space=vmem, size = 0x2000, scoped, tag = 'input window, operand 1, single buffered']
    #allocation6 [shape = 's32[1]{0}', space=sflag, size = 0x4, scoped, tag = 'scoped memory for tpu_custom_call.1']
    #allocation7 [shape = 'u8[6144]{0}', space=vmem, size = 0x1800, scoped, tag = 'output window, operand 0, single buffered']
    %8 = vsyncpa [#allocation3], 0
    %9 = vsyncpa [#allocation6], 0
    %10 = vsyncpa [#allocation4], 0
    // Predicated region
    $region2: #{tpu_custom_call.1} parent=1 // pred_check
      _
    $region3: #{tpu_custom_call.1} parent=1 // pred_check_branch
      %12 = sbr.rel (0) target = $region5
    $region4: #{tpu_custom_call.1} parent=1 // pred_region
      %14 = vsyncadd [#allocation3], 0
      %s15 = sshll.u32 %s0, 4
      %s16 = int_to_ptr.hbm [resolvable:$true] %s15
      %s17 = sshll.u32 [#allocation2], 4
      %s18 = int_to_ptr.vmem [resolvable:$true] %s17
      %23 = dma.hbm_to_vmem [thread:$0]  %s16, 192, %s18, [#allocation3], 64, 64, 4
    $region5: #{tpu_custom_call.1} parent=1 // pred_fallthru
      _
    // Predicated region
    $region6: #{tpu_custom_call.1} parent=1 // pred_check
      _
    $region7: #{tpu_custom_call.1} parent=1 // pred_check_branch
      %25 = sbr.rel (0) target = $region9
    $region8: #{tpu_custom_call.1} parent=1 // pred_region
      %27 = vsyncadd [#allocation6], 0
      %s28 = sshll.u32 %s1, 4
      %s29 = int_to_ptr.hbm [resolvable:$true] %s28
      %s30 = sshll.u32 [#allocation5], 4
      %s31 = int_to_ptr.vmem [resolvable:$true] %s30
      %36 = dma.hbm_to_vmem [thread:$0]  %s29, 256, %s31, [#allocation6], 64, 64, 4
    $region9: #{tpu_custom_call.1} parent=1 // pred_fallthru
      _
    // Predicated region
    $region10: #{tpu_custom_call.1} parent=1 // pred_check
      _
    $region11: #{tpu_custom_call.1} parent=1 // pred_check_branch
      %38 = sbr.rel (0) target = $region13
    $region12: #{tpu_custom_call.1} parent=1 // pred_region
      _
    $region13: #{tpu_custom_call.1} parent=1 // pred_fallthru
      _
    // Predicated region
    $region14: #{tpu_custom_call.1} parent=1 // pred_check
      _
    $region15: #{tpu_custom_call.1} parent=1 // pred_check_branch
      %40 = sbr.rel (0) target = $region17
    $region16: #{tpu_custom_call.1} parent=1 // pred_region
      %42 = dma.done [#allocation3], 192
    $region17: #{tpu_custom_call.1} parent=1 // pred_fallthru
      _
    // Predicated region
    $region18: #{tpu_custom_call.1} parent=1 // pred_check
      _
    $region19: #{tpu_custom_call.1} parent=1 // pred_check_branch
      %44 = sbr.rel (0) target = $region21
    $region20: #{tpu_custom_call.1} parent=1 // pred_region
      %46 = dma.done [#allocation6], 256
    $region21: #{tpu_custom_call.1} parent=1 // pred_fallthru
      _
    %v48 = vld [vmem:[#allocation2] sm:$0xf]
    %v49 = vld [vmem:[#allocation2 + $0x4] sm:$0xf]
    %v50 = vld [vmem:[#allocation2 + $0x8] sm:$0xf]
    %v51 = vld [vmem:[#allocation5] sm:$0xf]
    %v52 = vld [vmem:[#allocation5 + $0x4] sm:$0xf]
    %v53 = vld [vmem:[#allocation5 + $0x8] sm:$0xf]
    %v54 = vld [vmem:[#allocation5 + $0xc] sm:$0xf]
    %v55 = vld [vmem:[%s2] sm:$0x1]
    %v57 = vperm.slane %v55, 0
    %v62 = vunpack.c.l.b16 %v48
    %v63 = vunpack.c.l.b16 %v49
    %v64 = vunpack.c.l.b16 %v50
    %v65 = vpack.c.b16 %v63, %v62
    %v66 = vpack.c.b16 %v64, %v64
    %v71 = vunpack.c.l.b16 %v51
    %v72 = vunpack.c.l.b16 %v52
    %v73 = vunpack.c.l.b16 %v53
    %v74 = vunpack.c.l.b16 %v54
    %v75 = vpack.c.b16 %v72, %v71
    %v76 = vpack.c.b16 %v74, %v73
    %vm79 = vcmask 261120
    %v81 = vsel %vm79, %v65, 0
    %v84 = vsel %vm79, %v66, 0
    %86 = vmatpush.bf16.msra.mxu0 0
    %87 = vmatpush.bf16.msra.mxu0 0
    %88 = vmatpush.bf16.msra.mxu0 0
    %89 = vmatpush.bf16.msra.mxu0 0
    %90 = vmatpush.bf16.msra.mxu0 0
    %91 = vmatpush.bf16.msra.mxu0 0
    %92 = vmatpush.bf16.msra.mxu0 %v76
    %93 = vmatpush.bf16.msra.mxu0 %v75
    %94 = vmatmul.bf16.gmra.mxu0 %v81
    %v95 = vpop.f32.mrf.mxu0
    %v96 = vadd.f32 %v57, %v95
    %v97 = vpop.f32.mrf.mxu0
    %v98 = vadd.f32 %v57, %v97
    %99 = vmatmul.bf16.gmra.mxu0 %v84
    %v100 = vpop.f32.mrf.mxu0
    %v101 = vadd.f32 %v57, %v100
    %v102 = vpop.f32.mrf.mxu0
    %103 = vdwg.mxu0
    %v104 = vpack.c.bf16 %v96, %v96
    %v105 = vpack.c.bf16 %v98, %v98
    %v106 = vpack.c.bf16 %v101, %v101
    %107 = vst [vmem:[#allocation7] sm:$0xf] %v104
    %108 = vst [vmem:[#allocation7 + $0x4] sm:$0xf] %v105
    %109 = vst [vmem:[#allocation7 + $0x8] sm:$0xf] %v106
    // Predicated region
    $region22: #{tpu_custom_call.1} parent=1 // pred_check
      _
    $region23: #{tpu_custom_call.1} parent=1 // pred_check_branch
      %111 = sbr.rel (0) target = $region25
    $region24: #{tpu_custom_call.1} parent=1 // pred_region
      %113 = vsyncadd [#allocation4], 0
      %s114 = sshll.u32 [#allocation7], 4
      %s115 = int_to_ptr.vmem [resolvable:$true] %s114
      %s116 = sshll.u32 %s3, 4
      %s117 = int_to_ptr.hbm [resolvable:$true] %s116
      %122 = dma.vmem_to_hbm [thread:$0]  %s115, 192, %s117, [#allocation4], 64, 64, 4
    $region25: #{tpu_custom_call.1} parent=1 // pred_fallthru
      _
    // Predicated region
    $region26: #{tpu_custom_call.1} parent=1 // pred_check
      _
    $region27: #{tpu_custom_call.1} parent=1 // pred_check_branch
      %124 = sbr.rel (0) target = $region29
    $region28: #{tpu_custom_call.1} parent=1 // pred_region
      %126 = dma.done [#allocation4], 192
    $region29: #{tpu_custom_call.1} parent=1 // pred_fallthru
      _
    %127 = vsyncpa [#allocation3], 1
    %128 = vsyncpa [#allocation6], 1
    %129 = vsyncpa [#allocation4], 1

</llo_original>
